<compile_context>
chip_gen: v7x
topology: tpu7x:2x2x1
jax: 0.10.0
libtpu: 0.0.40
codegen_flags: <defaults>
</compile_context>

<pallas_src>
import math
import numpy as np
import jax
import jax.numpy as jnp
from jax.experimental import pallas as pl
from jax.experimental.pallas import tpu as pltpu


def time_embedding_kernel(x_ref, w_ref, o_ref):
    """Single lane-dense GEMM: packed patch rows @ block-diagonal weight."""
    o_ref[...] = jnp.dot(
        x_ref[...], w_ref[...], preferred_element_type=jnp.float32
    ).astype(o_ref.dtype)


def _pick_row_tile(n_rows, quantum, max_tile=1024):
    """Large tiles amortize per-step overhead; keep >=2 grid steps when possible
    (v7x has 2 TensorCores) and stay a multiple of `quantum`."""
    target = min(max_tile, max(quantum, pl.cdiv(n_rows, 2)))
    return pl.cdiv(target, quantum) * quantum


class TimeEmbeddingPallas:
    def __init__(self, in_channels, embedding_channels, patch_len, patch_stride,
                 patch_padding, key):
        self.patch_len = patch_len
        self.patch_stride = patch_stride
        self.patch_padding = patch_padding
        self.in_channels = in_channels
        self.embedding_channels = embedding_channels

        C, L, E = in_channels, patch_len, embedding_channels
        K = C * L

        # Deterministic init mirroring nn.Linear default (uniform +/- 1/sqrt(fan_in)).
        bound = 1.0 / math.sqrt(K)
        self.W = jax.random.uniform(key, (E, K), jnp.float32, -bound, bound)

        # Pack G consecutive patch rows into the lane dimension so the load,
        # the MXU contraction and the store are all >=128 lanes wide.
        G = 1
        while G * min(K, E) < 128 and G < 32:
            G *= 2
        self.G = G

        # Block-diagonal weight: out_packed = x_packed @ kron(I_G, W.T).
        w_t = np.asarray(self.W).T                              # (K, E)
        w_block = np.kron(np.eye(G, dtype=np.float32), w_t)     # (G*K, G*E)
        self.W_block = jnp.asarray(w_block, jnp.bfloat16)

    def __call__(self, x):
        B, C, T, V = x.shape
        L, st, pd = self.patch_len, self.patch_stride, self.patch_padding
        E, G = self.embedding_channels, self.G
        K = C * L

        # ---- glue (plain JAX): replication pad + unfold via strided slices ----
        xp = jnp.pad(x, ((0, 0), (0, 0), (0, pd), (0, 0)), mode="edge") if pd > 0 else x
        Tp = T + pd
        N = (Tp - L) // st + 1
        xt = jnp.transpose(xp, (0, 3, 2, 1))                    # (B, V, Tp, C)
        # feats[..., n, l*C + c] = xt[..., n*st + l, c]  (matches torch (L, C) flatten)
        cols = [xt[:, :, l:l + (N - 1) * st + 1:st, :] for l in range(L)]
        feats = jnp.concatenate(cols, axis=-1)                  # (B, V, N, L*C)
        # TODO(synk): pull the overlapping unfold into the kernel via manual DMA
        # (memory_space=pl.ANY) to avoid materializing the L/stride-duplicated slab.
        R = B * V * N
        xflat = feats.reshape(R, K).astype(jnp.bfloat16)

        # ---- pack rows into lanes + pad rows to the tile size -----------------
        quantum = 16 * G                    # bf16-friendly sublane multiple after packing
        TR = _pick_row_tile(R, quantum)
        Rp = pl.cdiv(R, TR) * TR
        if Rp != R:
            xflat = jnp.pad(xflat, ((0, Rp - R), (0, 0)))
        x_packed = xflat.reshape(Rp // G, G * K)                # lane-dense rows
        TRp = TR // G
        GK, GE = G * K, G * E

        cost = pl.CostEstimate(
            flops=2 * (Rp // G) * GK * GE,
            transcendentals=0,
            bytes_accessed=(x_packed.size * 2 + self.W_block.size * 2
                            + (Rp // G) * GE * 4),
        )

        out_packed = pl.pallas_call(
            time_embedding_kernel,
            out_shape=jax.ShapeDtypeStruct((Rp // G, GE), jnp.float32),
            grid_spec=pltpu.PrefetchScalarGridSpec(
                num_scalar_prefetch=0,
                grid=(Rp // TR,),
                in_specs=[
                    pl.BlockSpec((TRp, GK), lambda i: (i, 0)),
                    pl.BlockSpec((GK, GE), lambda i: (0, 0)),
                ],
                out_specs=pl.BlockSpec((TRp, GE), lambda i: (i, 0)),
            ),
            compiler_params=pltpu.CompilerParams(
                dimension_semantics=("parallel",),
                vmem_limit_bytes=32 * 1024 * 1024,
            ),
            cost_estimate=cost,
        )(x_packed, self.W_block)

        out = out_packed.reshape(Rp, E)[:R]                     # undo row packing (free)
        return out.reshape(B, V * N, E)


def reference_forward(x, W, L, st, pd):
    """Pure-JAX f32 reference matching the PyTorch forward."""
    B, C, T, V = x.shape
    xp = jnp.pad(x, ((0, 0), (0, 0), (0, pd), (0, 0)), mode="edge") if pd > 0 else x
    N = (T + pd - L) // st + 1
    idx = np.arange(N)[:, None] * st + np.arange(L)[None, :]
    xu = xp[:, :, idx, :]                       # (B, C, N, L, V)
    xu = jnp.transpose(xu, (0, 4, 2, 3, 1))     # (B, V, N, L, C)
    feats = xu.reshape(B, V, N, -1)             # (B, V, N, L*C)
    out = feats @ W.T                           # (B, V, N, E)
    return out.reshape(B, V * N, -1)


if __name__ == "__main__":
    key = jax.random.PRNGKey(0)
    kx, kw = jax.random.split(key)

    B, C, T, V = 2, 4, 16, 16
    patch_len, patch_stride, patch_padding = 8, 4, 4
    embedding_channels = 32

    x = jax.random.normal(kx, (B, C, T, V), jnp.float32)

    mod = TimeEmbeddingPallas(C, embedding_channels, patch_len, patch_stride,
                              patch_padding, kw)
    y = jax.block_until_ready(mod(x))

    N = (T + patch_padding - patch_len) // patch_stride + 1
    assert y.shape == (B, V * N, embedding_channels), y.shape

    y_ref = reference_forward(x, mod.W, patch_len, patch_stride, patch_padding)
    np.testing.assert_allclose(np.asarray(y), np.asarray(y_ref), rtol=5e-2, atol=5e-2)

    print("KERNEL_OK")
</pallas_src>

<mosaic_0001>
module attributes {stable_mosaic.version = 11 : i64} {
  func.func @time_embedding_kernel(%arg0: i32, %arg1: memref<16x128xbf16, #tpu.memory_space<vmem>>, %arg2: memref<128x128xbf16, #tpu.memory_space<vmem>>, %arg3: memref<16x128xf32, #tpu.memory_space<vmem>>) attributes {dimension_semantics = [#tpu.dimension_semantics<parallel>], iteration_bounds = array<i64: 2>, scalar_prefetch = 0 : i64, scratch_operands = 0 : i64, tpu.core_type = #tpu.core_type<tc>, window_params = [{transform_indices = @transform_0, window_bounds = array<i64: 16, 128>}, {pipeline_mode = #tpu.pipeline_mode<synchronous>, transform_indices = @transform_1, window_bounds = array<i64: 128, 128>}, {transform_indices = @transform_2, window_bounds = array<i64: 16, 128>}]} {
    %c0 = arith.constant 0 : index
    %c0_0 = arith.constant 0 : index
    %0 = vector.load %arg1[%c0, %c0_0] : memref<16x128xbf16, #tpu.memory_space<vmem>>, vector<16x128xbf16>
    %c0_1 = arith.constant 0 : index
    %c0_2 = arith.constant 0 : index
    %1 = vector.load %arg2[%c0_1, %c0_2] : memref<128x128xbf16, #tpu.memory_space<vmem>>, vector<128x128xbf16>
    %cst = arith.constant dense<0.000000e+00> : vector<16x128xf32>
    %2 = tpu.matmul %0, %1, %cst {dimension_numbers = #tpu.dot_dimension_numbers<[1], [0], [0], [1], [0, 0, 1, 1], [], []>} : vector<16x128xbf16>, vector<128x128xbf16>, vector<16x128xf32> -> vector<16x128xf32>
    %c0_3 = arith.constant 0 : index
    %c0_4 = arith.constant 0 : index
    %3 = vector.load %arg3[%c0_3, %c0_4] : memref<16x128xf32, #tpu.memory_space<vmem>>, vector<16x128xf32>
    tpu.vector_store %arg3[%c0_3, %c0_4], %2 {strides = array<i32>} : memref<16x128xf32, #tpu.memory_space<vmem>>, vector<16x128xf32>,
    return
  }
  func.func @transform_0(%arg0: i32) -> (i32, i32) {
    %c0_i32 = arith.constant 0 : i32
    %c0_i32_0 = arith.constant 0 : i32
    return %arg0, %c0_i32 : i32, i32
  }
  func.func @transform_1(%arg0: i32) -> (i32, i32) {
    %c0_i32 = arith.constant 0 : i32
    %c0_i32_0 = arith.constant 0 : i32
    %c0_i32_1 = arith.constant 0 : i32
    return %c0_i32, %c0_i32_0 : i32, i32
  }
  func.func @transform_2(%arg0: i32) -> (i32, i32) {
    %c0_i32 = arith.constant 0 : i32
    %c0_i32_0 = arith.constant 0 : i32
    return %arg0, %c0_i32 : i32, i32
  }
}

</mosaic_0001>

<llo_original>
// kernel: tpu_custom_call.1
$region0: #{tpu_custom_call.1}
  #allocation0 [shape = 'u32[]', space=smem, size = 0x4, offset = 0x4, fixed_abs, tag = 'smem constant byte address 0x4 - core index']
  #allocation1 [shape = 'u32[144,128]{1,0:T(1,128)}', space=vmem, size = 0x12000, scoped, tag = 'internal scratch']
  %s0 = inlined_call_operand.hbm [shape: bf16[32,128], index: 0, kind: input, shape index: {}]
  %s1 = inlined_call_operand.hbm [shape: bf16[128,128], index: 1, kind: input, shape index: {}]
  %s2 = inlined_call_operand.hbm [shape: f32[32,128], index: 2, kind: output, shape index: {}]
  %s3 = sld [smem:[#allocation0]]
  $region49: #{tpu_custom_call.1} parent=0
    _
  %s5 = ssub.s32 1, %s3
  %s6 = scalar_select 0, %s5, %s3
  $region1: #{tpu_custom_call.1} parent=0
    #allocation2 [shape = 'u8[8192]{0}', space=vmem, size = 0x2000, scoped, tag = 'input window, operand 0']
    #allocation3 [shape = 's32[2]{0}', space=sflag, size = 0x8, scoped, tag = 'scoped memory for tpu_custom_call.1']
    #allocation4 [shape = 's32[2]{0}', space=sflag, size = 0x8, scoped, tag = 'scoped memory for tpu_custom_call.1']
    #allocation5 [shape = 'u8[32768]{0}', space=vmem, size = 0x8000, scoped, tag = 'input window, operand 1, single buffered']
    #allocation6 [shape = 's32[1]{0}', space=sflag, size = 0x4, scoped, tag = 'scoped memory for tpu_custom_call.1']
    #allocation7 [shape = 'u8[16384]{0}', space=vmem, size = 0x4000, scoped, tag = 'output window, operand 0']
    %7 = vsyncpa [#allocation3], 0
    %s8 = scalar_lea.sflag [#allocation3], 1
    %9 = vsyncpa %s8, 0
    %10 = vsyncpa [#allocation6], 0
    %11 = vsyncpa [#allocation4], 0
    %s12 = scalar_lea.sflag [#allocation4], 1
    %13 = vsyncpa %s12, 0
    loop: start=0, step=1, limit=4
    $region2: #{tpu_custom_call.1} parent=1 // loop_pre_header
      _
    $region3: #{tpu_custom_call.1} parent=1 // loop_header
      %s15 = sphi 0, %s19
      %p16 = scmp.ge.s32.totalorder %s15, 4
      %s25 = sphi 0, %s27
      %s28 = sphi 0, %s25
      %s29 = sphi 0, %s28
      %s45 = sphi 0, %s29
      %s49 = sphi 0, %s49
      %s51 = sphi 0, %s49
      %s52 = sphi 0, %s51
      %s66 = sphi 0, %s52
      %s72 = sphi 0, %s74
      %s75 = sphi 0, %s72
      %s76 = sphi 0, %s75
      %s92 = sphi 0, %s76
    $region4: #{tpu_custom_call.1} parent=1 // loop_header_branch
      %18 = sbr.rel (%p16) target = $region8
    $region5: #{tpu_custom_call.1} parent=1 // loop_body
      %s20 = ssub.s32 %s15, 1
      %s21 = ssub.s32 %s15, 2
      %s22 = sadd.s32 %s15, 1
      %s23 = ssub.s32 %s15, %s22
      %p24 = scmp.eq.s32.totalorder %s23, 0
      %s26 = sadd.s32 %s25, 1
      %s27 = scalar_select %p24, %s25, %s26
      %p30 = pneg %p24
      %p31 = scmp.eq.s32.totalorder %s15, 1
      %p32 = por %p30, %p31
      %p33 = scmp.ne.s32.totalorder %s25, %s28
      %p34 = scmp.eq.s32.totalorder %s15, 0
      %p35 = por %p33, %p34
      %p36 = scmp.ne.s32.totalorder %s25, %s28
      %p37 = scmp.eq.s32.totalorder %s20, 1
      %p38 = por %p36, %p37
      %p39 = scmp.ne.s32.totalorder %s28, %s29
      %p40 = scmp.eq.s32.totalorder %s20, 0
      %p41 = por %p39, %p40
      %p42 = scmp.ne.s32.totalorder %s28, %s29
      %p43 = scmp.eq.s32.totalorder %s21, 1
      %p44 = por %p42, %p43
      %p46 = scmp.ne.s32.totalorder %s29, %s45
      %p47 = scmp.eq.s32.totalorder %s21, 0
      %p48 = por %p46, %p47
      %s50 = sadd.s32 %s49, 1
      %p53 = scmp.eq.s32.totalorder %s15, 1
      %p54 = scmp.ne.s32.totalorder %s49, %s51
      %p55 = scmp.eq.s32.totalorder %s15, 0
      %p56 = por %p54, %p55
      %p57 = scmp.ne.s32.totalorder %s49, %s51
      %p58 = scmp.eq.s32.totalorder %s20, 1
      %p59 = por %p57, %p58
      %p60 = scmp.ne.s32.totalorder %s51, %s52
      %p61 = scmp.eq.s32.totalorder %s20, 0
      %p62 = por %p60, %p61
      %p63 = scmp.ne.s32.totalorder %s51, %s52
      %p64 = scmp.eq.s32.totalorder %s21, 1
      %p65 = por %p63, %p64
      %p67 = scmp.ne.s32.totalorder %s52, %s66
      %p68 = scmp.eq.s32.totalorder %s21, 0
      %p69 = por %p67, %p68
      %s70 = ssub.s32 %s15, %s22
      %p71 = scmp.eq.s32.totalorder %s70, 0
      %s73 = sadd.s32 %s72, 1
      %s74 = scalar_select %p71, %s72, %s73
      %p77 = pneg %p71
      %p78 = scmp.eq.s32.totalorder %s15, 1
      %p79 = por %p77, %p78
      %p80 = scmp.ne.s32.totalorder %s72, %s75
      %p81 = scmp.eq.s32.totalorder %s15, 0
      %p82 = por %p80, %p81
      %p83 = scmp.ne.s32.totalorder %s72, %s75
      %p84 = scmp.eq.s32.totalorder %s20, 1
      %p85 = por %p83, %p84
      %p86 = scmp.ne.s32.totalorder %s75, %s76
      %p87 = scmp.eq.s32.totalorder %s20, 0
      %p88 = por %p86, %p87
      %p89 = scmp.ne.s32.totalorder %s75, %s76
      %p90 = scmp.eq.s32.totalorder %s21, 1
      %p91 = por %p89, %p90
      %p93 = scmp.ne.s32.totalorder %s76, %s92
      %p94 = scmp.eq.s32.totalorder %s21, 0
      %p95 = por %p93, %p94
      %p96 = scmp.le.s32.totalorder 1, %s15
      %p97 = scmp.lt.s32.totalorder %s15, 3
      %p98 = pnand %p96, %p97
      %p99 = pneg %p98
      // Predicated region
      $region9: #{tpu_custom_call.1} parent=5 // pred_check
        _
      $region10: #{tpu_custom_call.1} parent=5 // pred_check_branch
        %101 = sbr.rel (%p98) target = $region12
      $region11: #{tpu_custom_call.1} parent=5 // pred_region
        %s102 = ssub.s32 %s15, 1
        // Predicated region
        $region13: #{tpu_custom_call.1} parent=11 // pred_check
          %p103 = pneg %p62
        $region14: #{tpu_custom_call.1} parent=11 // pred_check_branch
          %105 = sbr.rel (%p103) target = $region16
        $region15: #{tpu_custom_call.1} parent=11 // pred_region
          %s107 = ssub.s32 1024, 1024
          %108 = vsyncadd [#allocation6], %s107
          %s109 = sshll.u32 [#allocation5], 4
          %s110 = int_to_ptr.vmem [resolvable:$true] %s109
          %115 = dma.hbm_to_vmem [thread:$0]  %s1, 1024, %s110, [#allocation6], 64, 64, 4
        $region16: #{tpu_custom_call.1} parent=11 // pred_fallthru
          _
      $region12: #{tpu_custom_call.1} parent=5 // pred_fallthru
        _
      %p116 = scmp.lt.s32.totalorder %s15, 2
      // Predicated region
      $region17: #{tpu_custom_call.1} parent=5 // pred_check
        %p117 = pneg %p116
      $region18: #{tpu_custom_call.1} parent=5 // pred_check_branch
        %119 = sbr.rel (%p117) target = $region20
      $region19: #{tpu_custom_call.1} parent=5 // pred_region
        // Predicated region
        $region21: #{tpu_custom_call.1} parent=19 // pred_check
          %p120 = pneg %p35
        $region22: #{tpu_custom_call.1} parent=19 // pred_check_branch
          %122 = sbr.rel (%p120) target = $region24
        $region23: #{tpu_custom_call.1} parent=19 // pred_region
          %s123 = sand.u32 %s25, 1
          %s124 = scalar_lea.sflag [#allocation3], %s123
          %s125 = sand.u32 %s25, 1
          %s126 = smul.addr %s125, 8
          %s127 = scalar_lea.vmem [#allocation2], %s126
          %s128 = smul.u32 2, %s15
          %s130 = ssub.s32 128, 128
          %131 = vsyncadd %s124, %s130
          %s132 = smul.addr %s128, 64
          %s133 = scalar_lea.hbm %s0, %s132
          %s134 = sshll.u32 %s127, 4
          %s135 = int_to_ptr.vmem [resolvable:$true] %s134
          %140 = dma.hbm_to_vmem [thread:$0]  %s133, 128, %s135, %s124, 64, 64, 4
        $region24: #{tpu_custom_call.1} parent=19 // pred_fallthru
          _
      $region20: #{tpu_custom_call.1} parent=5 // pred_fallthru
        _
      %p141 = scmp.le.s32.totalorder 1, %s15
      %p142 = scmp.lt.s32.totalorder %s15, 3
      %p143 = pnand %p141, %p142
      %p144 = pneg %p143
      // Predicated region
      $region25: #{tpu_custom_call.1} parent=5 // pred_check
        _
      $region26: #{tpu_custom_call.1} parent=5 // pred_check_branch
        %146 = sbr.rel (%p143) target = $region28
      $region27: #{tpu_custom_call.1} parent=5 // pred_region
        %s147 = ssub.s32 %s15, 1
        %s148 = sand.u32 %s28, 1
        %s149 = scalar_lea.sflag [#allocation3], %s148
        %s150 = sand.u32 %s28, 1
        %s151 = smul.addr %s150, 8
        %s152 = scalar_lea.vmem [#allocation2], %s151
        // Predicated region
        $region29: #{tpu_custom_call.1} parent=27 // pred_check
          %p153 = pneg %p41
        $region30: #{tpu_custom_call.1} parent=27 // pred_check_branch
          %155 = sbr.rel (%p153) target = $region32
        $region31: #{tpu_custom_call.1} parent=27 // pred_region
          %156 = dma.done %s149, 128
        $region32: #{tpu_custom_call.1} parent=27 // pred_fallthru
          _
        // Predicated region
        $region33: #{tpu_custom_call.1} parent=27 // pred_check
          %p157 = pneg %p62
        $region34: #{tpu_custom_call.1} parent=27 // pred_check_branch
          %159 = sbr.rel (%p157) target = $region36
        $region35: #{tpu_custom_call.1} parent=27 // pred_region
          %160 = dma.done [#allocation6], 1024
        $region36: #{tpu_custom_call.1} parent=27 // pred_fallthru
          _
        %s161 = sand.u32 %s28, 1
        %s162 = scalar_lea.sflag [#allocation3], %s161
        %s163 = sand.u32 %s28, 1
        %s164 = smul.addr %s163, 8
        %s165 = scalar_lea.vmem [#allocation2], %s164
        %p166 = pneg %p41
        %p167 = pneg %p38
        %p168 = pneg %p62
        %p169 = pneg %p59
        %p170 = pneg %p88
        %p171 = pneg %p85
        %s172 = sand.u32 %s75, 1
        %s173 = scalar_lea.sflag [#allocation4], %s172
        %s174 = sand.u32 %s75, 1
        %s175 = smul.addr %s174, 16
        %s176 = scalar_lea.vmem [#allocation7], %s175
        %s177 = smul.u32 2, %s20
        %s178 = smul.u32 2, %s20
        %v180 = vld [vmem:[%s152] sm:$0xf]
        %v181 = vld [vmem:[%s152 + $0x4] sm:$0xf]
        %v182 = vld [vmem:[#allocation5] sm:$0xf]
        %v183 = vld [vmem:[#allocation5 + $0x4] sm:$0xf]
        %v184 = vld [vmem:[#allocation5 + $0x8] sm:$0xf]
        %v185 = vld [vmem:[#allocation5 + $0xc] sm:$0xf]
        %v186 = vld [vmem:[#allocation5 + $0x10] sm:$0xf]
        %v187 = vld [vmem:[#allocation5 + $0x14] sm:$0xf]
        %v188 = vld [vmem:[#allocation5 + $0x18] sm:$0xf]
        %v189 = vld [vmem:[#allocation5 + $0x1c] sm:$0xf]
        %v190 = vld [vmem:[#allocation5 + $0x20] sm:$0xf]
        %v191 = vld [vmem:[#allocation5 + $0x24] sm:$0xf]
        %v192 = vld [vmem:[#allocation5 + $0x28] sm:$0xf]
        %v193 = vld [vmem:[#allocation5 + $0x2c] sm:$0xf]
        %v194 = vld [vmem:[#allocation5 + $0x30] sm:$0xf]
        %v195 = vld [vmem:[#allocation5 + $0x34] sm:$0xf]
        %v196 = vld [vmem:[#allocation5 + $0x38] sm:$0xf]
        %v197 = vld [vmem:[#allocation5 + $0x3c] sm:$0xf]
        %v200 = vunpack.c.l.b16 %v180
        %v201 = vunpack.c.l.b16 %v181
        %v202 = vpack.c.b16 %v201, %v200
        %v220 = vunpack.c.l.b16 %v182
        %v221 = vunpack.c.l.b16 %v183
        %v222 = vunpack.c.l.b16 %v184
        %v223 = vunpack.c.l.b16 %v185
        %v224 = vunpack.c.l.b16 %v186
        %v225 = vunpack.c.l.b16 %v187
        %v226 = vunpack.c.l.b16 %v188
        %v227 = vunpack.c.l.b16 %v189
        %v228 = vunpack.c.l.b16 %v190
        %v229 = vunpack.c.l.b16 %v191
        %v230 = vunpack.c.l.b16 %v192
        %v231 = vunpack.c.l.b16 %v193
        %v232 = vunpack.c.l.b16 %v194
        %v233 = vunpack.c.l.b16 %v195
        %v234 = vunpack.c.l.b16 %v196
        %v235 = vunpack.c.l.b16 %v197
        %v236 = vpack.c.b16 %v221, %v220
        %v237 = vpack.c.b16 %v223, %v222
        %v238 = vpack.c.b16 %v225, %v224
        %v239 = vpack.c.b16 %v227, %v226
        %v240 = vpack.c.b16 %v229, %v228
        %v241 = vpack.c.b16 %v231, %v230
        %v242 = vpack.c.b16 %v233, %v232
        %v243 = vpack.c.b16 %v235, %v234
        %252 = vmatprep.subr.bf16.mxu0 0
        %253 = vmatpush1.bf16.msra.mxu0 %v236
        %254 = vmatprep.subr.bf16.mxu0 0
        %255 = vmatpush1.bf16.msra.mxu0 %v237
        %256 = vmatprep.subr.bf16.mxu0 0
        %257 = vmatpush1.bf16.msra.mxu0 %v238
        %258 = vmatprep.subr.bf16.mxu0 0
        %259 = vmatpush1.bf16.msra.mxu0 %v239
        %260 = vmatprep.subr.bf16.mxu0 0
        %261 = vmatpush1.bf16.msra.mxu0 %v240
        %262 = vmatprep.subr.bf16.mxu0 0
        %263 = vmatpush1.bf16.msra.mxu0 %v241
        %264 = vmatprep.subr.bf16.mxu0 0
        %265 = vmatpush1.bf16.msra.mxu0 %v242
        %266 = vmatprep.subr.bf16.mxu0 0
        %267 = vmatpush1.bf16.msra.mxu0 %v243
        %268 = vmatprep.subr.bf16.mxu0 0
        %269 = vmatpush1.bf16.msra.mxu0 0
        %270 = vmatprep.subr.bf16.mxu0 0
        %271 = vmatpush1.bf16.msra.mxu0 0
        %272 = vmatprep.subr.bf16.mxu0 0
        %273 = vmatpush1.bf16.msra.mxu0 0
        %274 = vmatprep.subr.bf16.mxu0 0
        %275 = vmatpush1.bf16.msra.mxu0 0
        %276 = vmatprep.subr.bf16.mxu0 0
        %277 = vmatpush1.bf16.msra.mxu0 0
        %278 = vmatprep.subr.bf16.mxu0 0
        %279 = vmatpush1.bf16.msra.mxu0 0
        %280 = vmatprep.subr.bf16.mxu0 0
        %281 = vmatpush1.bf16.msra.mxu0 0
        %282 = vmatprep.subr.bf16.mxu0 0
        %283 = vmatpush1.bf16.msra.mxu0 0
        %284 = vmatprep.mubr.bf16.mxu0 0
        %285 = vmatmul.mubr.bf16.gmra.mrb[0].mxu0 %v202
        %v286 = vpop.f32.mrb[0].mxu0
        %v287 = vadd.f32 0.0, %v286
        %v288 = vpop.f32.mrb[0].mxu0
        %v289 = vpop.f32.mrb[0].mxu0
        %v290 = vadd.f32 0.0, %v289
        %v291 = vpop.f32.mrb[0].mxu0
        %292 = vdwg.mxu0
        %293 = vst [vmem:[%s176] sm:$0xff] %v287
        %294 = vst [vmem:[%s176 + $0x8] sm:$0xff] %v290
        %s295 = sand.u32 %s75, 1
        %s296 = scalar_lea.sflag [#allocation4], %s295
        %s297 = sand.u32 %s75, 1
        %s298 = smul.addr %s297, 16
        %s299 = scalar_lea.vmem [#allocation7], %s298
        // Predicated region
        $region37: #{tpu_custom_call.1} parent=27 // pred_check
          %p300 = pneg %p85
        $region38: #{tpu_custom_call.1} parent=27 // pred_check_branch
          %302 = sbr.rel (%p300) target = $region40
        $region39: #{tpu_custom_call.1} parent=27 // pred_region
          %s303 = smul.u32 2, %s20
          %s305 = ssub.s32 256, 256
          %306 = vsyncadd %s296, %s305
          %s307 = smul.addr %s303, 128
          %s308 = scalar_lea.hbm %s2, %s307
          %s309 = sshll.u32 %s299, 4
          %s310 = int_to_ptr.vmem [resolvable:$true] %s309
          %315 = dma.vmem_to_hbm [thread:$0]  %s310, 256, %s308, %s296, 128, 128, 8
        $region40: #{tpu_custom_call.1} parent=27 // pred_fallthru
          _
      $region28: #{tpu_custom_call.1} parent=5 // pred_fallthru
        _
      %p316 = scmp.le.s32.totalorder 2, %s15
      // Predicated region
      $region41: #{tpu_custom_call.1} parent=5 // pred_check
        %p317 = pneg %p316
      $region42: #{tpu_custom_call.1} parent=5 // pred_check_branch
        %319 = sbr.rel (%p317) target = $region44
      $region43: #{tpu_custom_call.1} parent=5 // pred_region
        %s320 = ssub.s32 %s15, 2
        // Predicated region
        $region45: #{tpu_custom_call.1} parent=43 // pred_check
          %p321 = pneg %p91
        $region46: #{tpu_custom_call.1} parent=43 // pred_check_branch
          %323 = sbr.rel (%p321) target = $region48
        $region47: #{tpu_custom_call.1} parent=43 // pred_region
          %s324 = sand.u32 %s76, 1
          %s325 = scalar_lea.sflag [#allocation4], %s324
          %s326 = sand.u32 %s76, 1
          %s327 = smul.addr %s326, 16
          %s328 = scalar_lea.vmem [#allocation7], %s327
          %329 = dma.done %s325, 256
        $region48: #{tpu_custom_call.1} parent=43 // pred_fallthru
          _
      $region44: #{tpu_custom_call.1} parent=5 // pred_fallthru
        _
    $region6: #{tpu_custom_call.1} parent=1 // loop_footer
      %s19 = sadd.s32 1, %s15
    $region7: #{tpu_custom_call.1} parent=1 // loop_footer_branch
      %14 = sbr.rel target = $region3
    $region8: #{tpu_custom_call.1} parent=1 // loop_exit
      _
    %330 = vsyncpa [#allocation3], 1
    %s331 = scalar_lea.sflag [#allocation3], 1
    %332 = vsyncpa %s331, 1
    %333 = vsyncpa [#allocation6], 1
    %334 = vsyncpa [#allocation4], 1
    %s335 = scalar_lea.sflag [#allocation4], 1
    %336 = vsyncpa %s335, 1

</llo_original>
